<compile_context>
chip_gen: v6e
topology: v6e:2x2x1
jax: 0.10.0
libtpu: 0.0.40
codegen_flags: <defaults>
</compile_context>

<pallas_src>
import jax
import jax.numpy as jnp
from jax import lax
from jax.experimental import pallas as pl
from jax.experimental.pallas import tpu as pltpu

NUM_HEADS = 13
PADDED_HEADS = 16  # lane/sublane-friendly; the 3 padded heads carry zero params


def session_hcov_kernel(item_ref, adj_ref, ss_ref, slen_ref, a_ref, t_ref, out_ref):
    N = adj_ref.shape[0]
    E = item_ref.shape[2]
    NH = a_ref.shape[1]

    item = item_ref[...]                     # (N, S, E) f32
    adj = adj_ref[...]                       # (N, N)    i32
    ss = ss_ref[...]                         # (N, N, E) f32
    slen = slen_ref[...]                     # (N, 1)    f32
    a_t = a_ref[...]                         # (E, NH)   heads 13..15 are zero
    t_t = t_ref[...]                         # (E, NH)

    # item_emb_lgcn = sum(item_embedding, dim=1) / session_len
    h = jnp.sum(item, axis=1) * pl.reciprocal(slen, approx=True)     # (N, E)

    # Pairwise elementwise products h[i]*h[j], flattened to (N*N, E);
    # lane (E) axis preserved by the reshape (layout no-op).
    hh = (h[:, None, :] * h[None, :, :]).reshape(N * N, E)
    ss2d = ss.reshape(N * N, E)

    # All 13(+3 padded) heads in two MXU matmuls: (N*N, E) @ (E, NH).
    e_all = jnp.dot(hh, a_t, preferred_element_type=jnp.float32)     # (N*N, NH)
    t_all = jnp.dot(ss2d, t_t, preferred_element_type=jnp.float32)   # (N*N, NH)
    s_all = e_all + t_all
    s_all = jnp.where(s_all >= 0.0, s_all, 0.2 * s_all)              # LeakyReLU(0.2)
    s3 = s_all.reshape(N, N, NH)

    # Head selection: alpha[i,j] = s3[i,j, adj[i,j]-1] if 1 <= adj <= 13 else -9e15.
    head_ids = lax.broadcasted_iota(jnp.int32, (N, N, NH), 2)
    onehot = head_ids == (adj[:, :, None] - 1)
    sel = jnp.sum(jnp.where(onehot, s3, 0.0), axis=-1)               # (N, N)
    valid = (adj >= 1) & (adj <= NUM_HEADS)
    alpha = jnp.where(valid, sel, jnp.float32(-9.0e15))

    # Row softmax.
    m = jnp.max(alpha, axis=-1, keepdims=True)
    ex = jnp.exp(alpha - m)
    attn = ex * pl.reciprocal(jnp.sum(ex, axis=-1, keepdims=True), approx=True)

    # output = alpha @ h
    out_ref[...] = jnp.dot(attn, h, preferred_element_type=jnp.float32).astype(out_ref.dtype)


def session_hcov_forward(item_embedding, overlap_type, matrix, session_stamp,
                         session_len, a_n, t_n):
    # `matrix` only feeds self.jacard_transform whose output (a_input_jac) is
    # never used in the PyTorch forward -> dead code, intentionally not computed.
    del matrix
    N, S, E = item_embedding.shape

    # Host-side param packing: zero-pad heads 13 -> 16 and pre-transpose to
    # (E, 16) so the kernel contracts over E directly on the MXU (no in-kernel
    # transpose, no per-head broadcasts).
    a_t = jnp.zeros((E, PADDED_HEADS), jnp.float32).at[:, :NUM_HEADS].set(a_n.T)
    t_t = jnp.zeros((E, PADDED_HEADS), jnp.float32).at[:, :NUM_HEADS].set(t_n.T)

    vmem = pltpu.MemorySpace.VMEM
    return pl.pallas_call(
        session_hcov_kernel,
        out_shape=jax.ShapeDtypeStruct((N, E), jnp.float32),
        in_specs=[pl.BlockSpec(memory_space=vmem) for _ in range(6)],
        out_specs=pl.BlockSpec(memory_space=vmem),
    )(item_embedding, overlap_type.astype(jnp.int32), session_stamp,
      session_len, a_t, t_t)
    # TODO(synk): if many independent session batches are processed, add a
    # leading "parallel" grid axis over session groups (sized for v7x's 64 MiB
    # VMEM) to amortize launch/step overhead and use both v7x TensorCores.


if __name__ == "__main__":
    # Shapes consistent with the module: batch_size N = 8, seq S = 8, emb_size E = 32.
    N, S, E = 8, 8, 32
    key = jax.random.PRNGKey(0)
    k1, k2, k3, k4, k5, k6, k7 = jax.random.split(key, 7)

    item_embedding = jax.random.normal(k1, (N, S, E), dtype=jnp.float32)
    overlap_type = jax.random.randint(k2, (N, N), 0, 14).astype(jnp.int32)   # values 0..13
    matrix = jax.random.uniform(k3, (N, N), dtype=jnp.float32)
    session_stamp = jax.random.normal(k4, (N, N, E), dtype=jnp.float32)
    session_len = jax.random.randint(k5, (N, 1), 1, S + 1).astype(jnp.float32)

    # Parameters: nn.ParameterList of 13 x (E, 1) randn vectors, stacked as (13, E).
    a_n = jax.random.normal(k6, (NUM_HEADS, E), dtype=jnp.float32)
    t_n = jax.random.normal(k7, (NUM_HEADS, E), dtype=jnp.float32)

    out = session_hcov_forward(item_embedding, overlap_type, matrix,
                               session_stamp, session_len, a_n, t_n)
    jax.block_until_ready(out)
    assert out.shape == (N, E) and out.dtype == jnp.float32
    print("KERNEL_OK")
</pallas_src>

<mosaic_0001>
module attributes {stable_mosaic.version = 11 : i64} {
  func.func @session_hcov_kernel(%arg0: memref<8x8x32xf32, #tpu.memory_space<vmem>>, %arg1: memref<8x8xi32, #tpu.memory_space<vmem>>, %arg2: memref<8x8x32xf32, #tpu.memory_space<vmem>>, %arg3: memref<8x1xf32, #tpu.memory_space<vmem>>, %arg4: memref<32x16xf32, #tpu.memory_space<vmem>>, %arg5: memref<32x16xf32, #tpu.memory_space<vmem>>, %arg6: memref<8x32xf32, #tpu.memory_space<vmem>>) attributes {dimension_semantics = [], scalar_prefetch = 0 : i64, scratch_operands = 0 : i64, tpu.core_type = #tpu.core_type<tc>} {
    %c0 = arith.constant 0 : index
    %c0_0 = arith.constant 0 : index
    %c0_1 = arith.constant 0 : index
    %0 = vector.load %arg0[%c0, %c0_0, %c0_1] : memref<8x8x32xf32, #tpu.memory_space<vmem>>, vector<8x8x32xf32>
    %c0_2 = arith.constant 0 : index
    %c0_3 = arith.constant 0 : index
    %1 = vector.load %arg1[%c0_2, %c0_3] : memref<8x8xi32, #tpu.memory_space<vmem>>, vector<8x8xi32>
    %c0_4 = arith.constant 0 : index
    %c0_5 = arith.constant 0 : index
    %c0_6 = arith.constant 0 : index
    %2 = vector.load %arg2[%c0_4, %c0_5, %c0_6] : memref<8x8x32xf32, #tpu.memory_space<vmem>>, vector<8x8x32xf32>
    %c0_7 = arith.constant 0 : index
    %c0_8 = arith.constant 0 : index
    %3 = vector.load %arg3[%c0_7, %c0_8] : memref<8x1xf32, #tpu.memory_space<vmem>>, vector<8x1xf32>
    %c0_9 = arith.constant 0 : index
    %c0_10 = arith.constant 0 : index
    %4 = vector.load %arg4[%c0_9, %c0_10] : memref<32x16xf32, #tpu.memory_space<vmem>>, vector<32x16xf32>
    %c0_11 = arith.constant 0 : index
    %c0_12 = arith.constant 0 : index
    %5 = vector.load %arg5[%c0_11, %c0_12] : memref<32x16xf32, #tpu.memory_space<vmem>>, vector<32x16xf32>
    %cst = arith.constant dense<0.000000e+00> : vector<8x32xf32>
    %6 = vector.multi_reduction <add>, %0, %cst [1] : vector<8x8x32xf32> to vector<8x32xf32>
    %7 = tpu.reciprocal %3 {approx = true} : vector<8x1xf32> -> vector<8x1xf32>
    %8 = vector.broadcast %7 : vector<8x1xf32> to vector<8x32xf32>
    %9 = arith.mulf %6, %8 : vector<8x32xf32>
    %10 = vector.shape_cast %9 : vector<8x32xf32> to vector<8x1x32xf32>
    %11 = vector.shape_cast %9 : vector<8x32xf32> to vector<1x8x32xf32>
    %12 = vector.broadcast %10 : vector<8x1x32xf32> to vector<8x8x32xf32>
    %13 = vector.broadcast %11 : vector<1x8x32xf32> to vector<8x8x32xf32>
    %14 = arith.mulf %12, %13 : vector<8x8x32xf32>
    %15 = vector.shape_cast %14 : vector<8x8x32xf32> to vector<64x32xf32>
    %16 = vector.shape_cast %2 : vector<8x8x32xf32> to vector<64x32xf32>
    %cst_13 = arith.constant dense<0.000000e+00> : vector<64x16xf32>
    %17 = tpu.matmul %15, %4, %cst_13 {dimension_numbers = #tpu.dot_dimension_numbers<[1], [0], [0], [1], [0, 0, 1, 1], [], []>} : vector<64x32xf32>, vector<32x16xf32>, vector<64x16xf32> -> vector<64x16xf32>
    %cst_14 = arith.constant dense<0.000000e+00> : vector<64x16xf32>
    %18 = tpu.matmul %16, %5, %cst_14 {dimension_numbers = #tpu.dot_dimension_numbers<[1], [0], [0], [1], [0, 0, 1, 1], [], []>} : vector<64x32xf32>, vector<32x16xf32>, vector<64x16xf32> -> vector<64x16xf32>
    %19 = arith.addf %17, %18 : vector<64x16xf32>
    %cst_15 = arith.constant 0.000000e+00 : f32
    %20 = vector.broadcast %cst_15 : f32 to vector<64x16xf32>
    %21 = arith.cmpf oge, %19, %20 : vector<64x16xf32>
    %cst_16 = arith.constant 2.000000e-01 : f32
    %22 = vector.broadcast %cst_16 : f32 to vector<64x16xf32>
    %23 = arith.mulf %22, %19 : vector<64x16xf32>
    %24 = arith.select %21, %19, %23 : vector<64x16xi1>, vector<64x16xf32>
    %25 = vector.shape_cast %24 : vector<64x16xf32> to vector<8x8x16xf32>
    %26 = tpu.iota {dimensions = array<i32: 2>} : vector<8x8x16xi32>
    %27 = vector.shape_cast %1 : vector<8x8xi32> to vector<8x8x1xi32>
    %c1_i32 = arith.constant 1 : i32
    %28 = vector.broadcast %c1_i32 : i32 to vector<8x8x1xi32>
    %29 = arith.subi %27, %28 : vector<8x8x1xi32>
    %30 = vector.broadcast %29 : vector<8x8x1xi32> to vector<8x8x16xi32>
    %31 = arith.cmpi eq, %26, %30 : vector<8x8x16xi32>
    %cst_17 = arith.constant 0.000000e+00 : f32
    %32 = vector.broadcast %cst_17 : f32 to vector<8x8x16xf32>
    %33 = arith.select %31, %25, %32 : vector<8x8x16xi1>, vector<8x8x16xf32>
    %cst_18 = arith.constant dense<0.000000e+00> : vector<8x8xf32>
    %34 = vector.multi_reduction <add>, %33, %cst_18 [2] : vector<8x8x16xf32> to vector<8x8xf32>
    %c1_i32_19 = arith.constant 1 : i32
    %35 = vector.broadcast %c1_i32_19 : i32 to vector<8x8xi32>
    %36 = arith.cmpi sge, %1, %35 : vector<8x8xi32>
    %c13_i32 = arith.constant 13 : i32
    %37 = vector.broadcast %c13_i32 : i32 to vector<8x8xi32>
    %38 = arith.cmpi sle, %1, %37 : vector<8x8xi32>
    %39 = arith.andi %36, %38 : vector<8x8xi1>
    %cst_20 = arith.constant -9.000000e+15 : f32
    %40 = vector.broadcast %cst_20 : f32 to vector<8x8xf32>
    %41 = arith.select %39, %34, %40 : vector<8x8xi1>, vector<8x8xf32>
    %cst_21 = arith.constant dense<0xFF800000> : vector<8xf32>
    %42 = vector.multi_reduction <maximumf>, %41, %cst_21 [1] : vector<8x8xf32> to vector<8xf32>
    %43 = vector.shape_cast %42 : vector<8xf32> to vector<8x1xf32>
    %44 = vector.broadcast %43 : vector<8x1xf32> to vector<8x8xf32>
    %45 = arith.subf %41, %44 : vector<8x8xf32>
    %46 = math.exp %45 : vector<8x8xf32>
    %cst_22 = arith.constant dense<0.000000e+00> : vector<8xf32>
    %47 = vector.multi_reduction <add>, %46, %cst_22 [1] : vector<8x8xf32> to vector<8xf32>
    %48 = vector.shape_cast %47 : vector<8xf32> to vector<8x1xf32>
    %49 = tpu.reciprocal %48 {approx = true} : vector<8x1xf32> -> vector<8x1xf32>
    %50 = vector.broadcast %49 : vector<8x1xf32> to vector<8x8xf32>
    %51 = arith.mulf %46, %50 : vector<8x8xf32>
    %cst_23 = arith.constant dense<0.000000e+00> : vector<8x32xf32>
    %52 = tpu.matmul %51, %9, %cst_23 {dimension_numbers = #tpu.dot_dimension_numbers<[1], [0], [0], [1], [0, 0, 1, 1], [], []>} : vector<8x8xf32>, vector<8x32xf32>, vector<8x32xf32> -> vector<8x32xf32>
    %c0_24 = arith.constant 0 : index
    %c0_25 = arith.constant 0 : index
    %53 = vector.load %arg6[%c0_24, %c0_25] : memref<8x32xf32, #tpu.memory_space<vmem>>, vector<8x32xf32>
    tpu.vector_store %arg6[%c0_24, %c0_25], %52 {strides = array<i32>} : memref<8x32xf32, #tpu.memory_space<vmem>>, vector<8x32xf32>,
    return
  }
}

</mosaic_0001>

<llo_original>
// kernel: tpu_custom_call.1
$region0: #{tpu_custom_call.1}
  #allocation0 [shape = 'u32[]', space=smem, size = 0x4, offset = 0x4, fixed_abs, tag = 'smem constant byte address 0x4 - core index']
  #allocation1 [shape = 'u32[144,128]{1,0:T(1,128)}', space=vmem, size = 0x12000, scoped, tag = 'internal scratch']
  %s0 = inlined_call_operand.vmem [shape: f32[8,8,32], index: 0, kind: input, shape index: {}]
  %s1 = inlined_call_operand.vmem [shape: s32[8,8], index: 1, kind: input, shape index: {}]
  %s2 = inlined_call_operand.hbm [shape: f32[8,8,32], index: 2, kind: input, shape index: {}]
  %s3 = inlined_call_operand.vmem [shape: f32[8,1], index: 3, kind: input, shape index: {}]
  %s4 = inlined_call_operand.vmem [shape: f32[32,16], index: 4, kind: input, shape index: {}]
  %s5 = inlined_call_operand.vmem [shape: f32[32,16], index: 5, kind: input, shape index: {}]
  %s6 = inlined_call_operand.hbm [shape: f32[8,32], index: 6, kind: output, shape index: {}]
  %s7 = sld [smem:[#allocation0]]
  $region38: #{tpu_custom_call.1} parent=0
    _
  %s9 = ssub.s32 1, %s7
  %s10 = scalar_select 0, %s9, %s7
  $region1: #{tpu_custom_call.1} parent=0
    #allocation2 [shape = 'u8[32768]{0}', space=vmem, size = 0x8000, scoped, tag = 'input window, operand 2, single buffered']
    #allocation3 [shape = 's32[1]{0}', space=sflag, size = 0x4, scoped, tag = 'scoped memory for tpu_custom_call.1']
    #allocation4 [shape = 's32[1]{0}', space=sflag, size = 0x4, scoped, tag = 'scoped memory for tpu_custom_call.1']
    #allocation5 [shape = 'u8[4096]{0}', space=vmem, size = 0x1000, scoped, tag = 'output window, operand 0, single buffered']
    %11 = vsyncpa [#allocation3], 0
    %12 = vsyncpa [#allocation4], 0
    // Predicated region
    $region2: #{tpu_custom_call.1} parent=1 // pred_check
      _
    $region3: #{tpu_custom_call.1} parent=1 // pred_check_branch
      %14 = sbr.rel (0) target = $region5
    $region4: #{tpu_custom_call.1} parent=1 // pred_region
      _
    $region5: #{tpu_custom_call.1} parent=1 // pred_fallthru
      _
    // Predicated region
    $region6: #{tpu_custom_call.1} parent=1 // pred_check
      _
    $region7: #{tpu_custom_call.1} parent=1 // pred_check_branch
      %16 = sbr.rel (0) target = $region9
    $region8: #{tpu_custom_call.1} parent=1 // pred_region
      _
    $region9: #{tpu_custom_call.1} parent=1 // pred_fallthru
      _
    // Predicated region
    $region10: #{tpu_custom_call.1} parent=1 // pred_check
      _
    $region11: #{tpu_custom_call.1} parent=1 // pred_check_branch
      %18 = sbr.rel (0) target = $region13
    $region12: #{tpu_custom_call.1} parent=1 // pred_region
      %s20 = ssub.s32 1024, 1024
      %21 = vsyncadd [#allocation3], %s20
      %s22 = sshll.u32 [#allocation2], 4
      %s23 = int_to_ptr.vmem [resolvable:$true] %s22
      %28 = dma.hbm_to_vmem [thread:$0]  %s2, 1024, %s23, [#allocation3], 128, 128, 8
    $region13: #{tpu_custom_call.1} parent=1 // pred_fallthru
      _
    // Predicated region
    $region14: #{tpu_custom_call.1} parent=1 // pred_check
      _
    $region15: #{tpu_custom_call.1} parent=1 // pred_check_branch
      %30 = sbr.rel (0) target = $region17
    $region16: #{tpu_custom_call.1} parent=1 // pred_region
      _
    $region17: #{tpu_custom_call.1} parent=1 // pred_fallthru
      _
    // Predicated region
    $region18: #{tpu_custom_call.1} parent=1 // pred_check
      _
    $region19: #{tpu_custom_call.1} parent=1 // pred_check_branch
      %32 = sbr.rel (0) target = $region21
    $region20: #{tpu_custom_call.1} parent=1 // pred_region
      _
    $region21: #{tpu_custom_call.1} parent=1 // pred_fallthru
      _
    // Predicated region
    $region22: #{tpu_custom_call.1} parent=1 // pred_check
      _
    $region23: #{tpu_custom_call.1} parent=1 // pred_check_branch
      %34 = sbr.rel (0) target = $region25
    $region24: #{tpu_custom_call.1} parent=1 // pred_region
      _
    $region25: #{tpu_custom_call.1} parent=1 // pred_fallthru
      _
    // Predicated region
    $region26: #{tpu_custom_call.1} parent=1 // pred_check
      _
    $region27: #{tpu_custom_call.1} parent=1 // pred_check_branch
      %36 = sbr.rel (0) target = $region29
    $region28: #{tpu_custom_call.1} parent=1 // pred_region
      %37 = dma.done [#allocation3], 1024
    $region29: #{tpu_custom_call.1} parent=1 // pred_fallthru
      _
    %v38 = vld [vmem:[%s0] sm:$0xff]
    %v39 = vld [vmem:[%s0 + $0x8] sm:$0xff]
    %v40 = vld [vmem:[%s0 + $0x10] sm:$0xff]
    %v41 = vld [vmem:[%s0 + $0x18] sm:$0xff]
    %v42 = vld [vmem:[%s0 + $0x20] sm:$0xff]
    %v43 = vld [vmem:[%s0 + $0x28] sm:$0xff]
    %v44 = vld [vmem:[%s0 + $0x30] sm:$0xff]
    %v45 = vld [vmem:[%s0 + $0x38] sm:$0xff]
    %v46 = vld [vmem:[%s1] sm:$0xff]
    %v47 = vld [vmem:[#allocation2] sm:$0xff]
    %v48 = vld [vmem:[#allocation2 + $0x8] sm:$0xff]
    %v49 = vld [vmem:[#allocation2 + $0x10] sm:$0xff]
    %v50 = vld [vmem:[#allocation2 + $0x18] sm:$0xff]
    %v51 = vld [vmem:[#allocation2 + $0x20] sm:$0xff]
    %v52 = vld [vmem:[#allocation2 + $0x28] sm:$0xff]
    %v53 = vld [vmem:[#allocation2 + $0x30] sm:$0xff]
    %v54 = vld [vmem:[#allocation2 + $0x38] sm:$0xff]
    %v55 = vld [vmem:[%s3] sm:$0xff]
    %v56 = vld [vmem:[%s4] sm:$0xff]
    %v57 = vld [vmem:[%s4 + $0x8] sm:$0xff]
    %v58 = vld [vmem:[%s4 + $0x10] sm:$0xff]
    %v59 = vld [vmem:[%s4 + $0x18] sm:$0xff]
    %v60 = vld [vmem:[%s5] sm:$0xff]
    %v61 = vld [vmem:[%s5 + $0x8] sm:$0xff]
    %v62 = vld [vmem:[%s5 + $0x10] sm:$0xff]
    %v63 = vld [vmem:[%s5 + $0x18] sm:$0xff]
    %vm64 = vcmask 261120
    %v65 = vsel %vm64, %v38, 0.0
    %v66 = vrot.slane %v65, 4
    %v67 = vadd.f32 %v65, %v66
    %v68 = vrot.slane %v67, 2
    %v69 = vadd.f32 %v67, %v68
    %v70 = vrot.slane %v69, 1
    %v71 = vadd.f32 %v69, %v70
    %v72 = vsel %vm64, %v39, 0.0
    %v73 = vrot.slane %v72, 4
    %v74 = vadd.f32 %v72, %v73
    %v75 = vrot.slane %v74, 2
    %v76 = vadd.f32 %v74, %v75
    %v77 = vrot.slane %v76, 1
    %v78 = vadd.f32 %v76, %v77
    %v79 = vsel %vm64, %v40, 0.0
    %v80 = vrot.slane %v79, 4
    %v81 = vadd.f32 %v79, %v80
    %v82 = vrot.slane %v81, 2
    %v83 = vadd.f32 %v81, %v82
    %v84 = vrot.slane %v83, 1
    %v85 = vadd.f32 %v83, %v84
    %v86 = vsel %vm64, %v41, 0.0
    %v87 = vrot.slane %v86, 4
    %v88 = vadd.f32 %v86, %v87
    %v89 = vrot.slane %v88, 2
    %v90 = vadd.f32 %v88, %v89
    %v91 = vrot.slane %v90, 1
    %v92 = vadd.f32 %v90, %v91
    %v93 = vsel %vm64, %v42, 0.0
    %v94 = vrot.slane %v93, 4
    %v95 = vadd.f32 %v93, %v94
    %v96 = vrot.slane %v95, 2
    %v97 = vadd.f32 %v95, %v96
    %v98 = vrot.slane %v97, 1
    %v99 = vadd.f32 %v97, %v98
    %v100 = vsel %vm64, %v43, 0.0
    %v101 = vrot.slane %v100, 4
    %v102 = vadd.f32 %v100, %v101
    %v103 = vrot.slane %v102, 2
    %v104 = vadd.f32 %v102, %v103
    %v105 = vrot.slane %v104, 1
    %v106 = vadd.f32 %v104, %v105
    %v107 = vsel %vm64, %v44, 0.0
    %v108 = vrot.slane %v107, 4
    %v109 = vadd.f32 %v107, %v108
    %v110 = vrot.slane %v109, 2
    %v111 = vadd.f32 %v109, %v110
    %v112 = vrot.slane %v111, 1
    %v113 = vadd.f32 %v111, %v112
    %v114 = vsel %vm64, %v45, 0.0
    %v115 = vrot.slane %v114, 4
    %v116 = vadd.f32 %v114, %v115
    %v117 = vrot.slane %v116, 2
    %v118 = vadd.f32 %v116, %v117
    %v119 = vrot.slane %v118, 1
    %v120 = vadd.f32 %v118, %v119
    %v121 = vrcp.pop %v55
    %123 = vset.pattern.permute.xlu0 0
    %124 = vperm.xlu0 %123, %v121
    %v125 = vpop.permute.xlu0 %124
    %v126 = vrot.slane %v125, 1
    %v127 = vrot.slane %v125, 2
    %v128 = vrot.slane %v125, 3
    %v129 = vrot.slane %v125, 4
    %v130 = vrot.slane %v125, 5
    %v131 = vrot.slane %v125, 6
    %v132 = vrot.slane %v125, 7
    %v141 = vmul.f32 %v71, %v125
    %v142 = vmul.f32 %v78, %v126
    %v143 = vmul.f32 %v85, %v127
    %v144 = vmul.f32 %v92, %v128
    %v145 = vmul.f32 %v99, %v129
    %v146 = vmul.f32 %v106, %v130
    %v147 = vmul.f32 %v113, %v131
    %v148 = vmul.f32 %v120, %v132
    %v149 = vlaneseq
    %v150 = vshrl.u32 %v149, 7
    %v151 = vsub.s32 0, %v150
    %v152 = vrot.slane %v141, %v151
    %v153 = vlaneseq
    %v154 = vshrl.u32 %v153, 7
    %v155 = vsub.s32 0, %v154
    %v156 = vrot.slane %v142, %v155
    %v157 = vlaneseq
    %v158 = vshrl.u32 %v157, 7
    %v159 = vsub.s32 0, %v158
    %v160 = vrot.slane %v143, %v159
    %v161 = vlaneseq
    %v162 = vshrl.u32 %v161, 7
    %v163 = vsub.s32 0, %v162
    %v164 = vrot.slane %v144, %v163
    %v165 = vlaneseq
    %v166 = vshrl.u32 %v165, 7
    %v167 = vsub.s32 0, %v166
    %v168 = vrot.slane %v145, %v167
    %v169 = vlaneseq
    %v170 = vshrl.u32 %v169, 7
    %v171 = vsub.s32 0, %v170
    %v172 = vrot.slane %v146, %v171
    %v173 = vlaneseq
    %v174 = vshrl.u32 %v173, 7
    %v175 = vsub.s32 0, %v174
    %v176 = vrot.slane %v147, %v175
    %v177 = vlaneseq
    %v178 = vshrl.u32 %v177, 7
    %v179 = vsub.s32 0, %v178
    %v180 = vrot.slane %v148, %v179
    %v189 = vrot.slane %v142, 7
    %vm190 = vcmask 1041409
    %v191 = vsel %vm190, %v189, %v141
    %v192 = vrot.slane %v143, 6
    %vm193 = vcmask 1042434
    %v194 = vsel %vm193, %v192, %v191
    %v195 = vrot.slane %v144, 5
    %vm196 = vcmask 1043459
    %v197 = vsel %vm196, %v195, %v194
    %v198 = vrot.slane %v145, 4
    %vm199 = vcmask 1044484
    %v200 = vsel %vm199, %v198, %v197
    %v201 = vrot.slane %v146, 3
    %vm202 = vcmask 1045509
    %v203 = vsel %vm202, %v201, %v200
    %v204 = vrot.slane %v147, 2
    %vm205 = vcmask 1046534
    %v206 = vsel %vm205, %v204, %v203
    %v207 = vrot.slane %v148, 1
    %vm208 = vcmask 1047559
    %v209 = vsel %vm208, %v207, %v206
    %v211 = vmul.f32 %v152, %v209
    %v212 = vmul.f32 %v156, %v209
    %v213 = vmul.f32 %v160, %v209
    %v214 = vmul.f32 %v164, %v209
    %v215 = vmul.f32 %v168, %v209
    %v216 = vmul.f32 %v172, %v209
    %v217 = vmul.f32 %v176, %v209
    %v218 = vmul.f32 %v180, %v209
    %v220 = vsel %vm64, %v47, 0
    %v223 = vsel %vm64, %v48, 0
    %v226 = vsel %vm64, %v49, 0
    %v229 = vsel %vm64, %v50, 0
    %v232 = vsel %vm64, %v51, 0
    %v235 = vsel %vm64, %v52, 0
    %v238 = vsel %vm64, %v53, 0
    %v241 = vsel %vm64, %v54, 0
    %243 = vmatprep.subr.mxu0 0.0
    %244 = vmatpush1.msra.mxu0 0.0
    %245 = vmatprep.subr.mxu0 0.0
    %246 = vmatpush1.msra.mxu0 0.0
    %247 = vmatprep.subr.mxu0 0.0
    %248 = vmatpush1.msra.mxu0 0.0
    %249 = vmatprep.subr.mxu0 0.0
    %250 = vmatpush1.msra.mxu0 0.0
    %251 = vmatprep.subr.mxu0 0.0
    %252 = vmatpush1.msra.mxu0 0.0
    %253 = vmatprep.subr.mxu0 0.0
    %254 = vmatpush1.msra.mxu0 0.0
    %255 = vmatprep.subr.mxu0 0.0
    %256 = vmatpush1.msra.mxu0 0.0
    %257 = vmatprep.subr.mxu0 0.0
    %258 = vmatpush1.msra.mxu0 0.0
    %259 = vmatprep.subr.mxu0 0.0
    %260 = vmatpush1.msra.mxu0 0.0
    %261 = vmatprep.subr.mxu0 0.0
    %262 = vmatpush1.msra.mxu0 0.0
    %263 = vmatprep.subr.mxu0 0.0
    %264 = vmatpush1.msra.mxu0 0.0
    %265 = vmatprep.subr.mxu0 0.0
    %266 = vmatpush1.msra.mxu0 0.0
    %267 = vmatprep.subr.mxu0 0.0
    %268 = vmatpush1.msra.mxu0 %v63
    %269 = vmatprep.subr.mxu0 0.0
    %270 = vmatpush1.msra.mxu0 %v62
    %271 = vmatprep.subr.mxu0 0.0
    %272 = vmatpush1.msra.mxu0 %v61
    %273 = vmatprep.subr.mxu0 0.0
    %274 = vmatpush1.msra.mxu0 %v60
    %275 = vmatprep.subr.mxu0 0.0
    %276 = vmatpush2.msra.mxu0 0.0
    %277 = vmatprep.subr.mxu0 0.0
    %278 = vmatpush2.msra.mxu0 0.0
    %279 = vmatprep.subr.mxu0 0.0
    %280 = vmatpush2.msra.mxu0 0.0
    %281 = vmatprep.subr.mxu0 0.0
    %282 = vmatpush2.msra.mxu0 0.0
    %283 = vmatprep.subr.mxu0 0.0
    %284 = vmatpush2.msra.mxu0 0.0
    %285 = vmatprep.subr.mxu0 0.0
    %286 = vmatpush2.msra.mxu0 0.0
    %287 = vmatprep.subr.mxu0 0.0
    %288 = vmatpush2.msra.mxu0 0.0
    %289 = vmatprep.subr.mxu0 0.0
    %290 = vmatpush2.msra.mxu0 0.0
    %291 = vmatprep.subr.mxu0 0.0
    %292 = vmatpush2.msra.mxu0 0.0
    %293 = vmatprep.subr.mxu0 0.0
    %294 = vmatpush2.msra.mxu0 0.0
    %295 = vmatprep.subr.mxu0 0.0
    %296 = vmatpush2.msra.mxu0 0.0
    %297 = vmatprep.subr.mxu0 0.0
    %298 = vmatpush2.msra.mxu0 0.0
    %299 = vmatprep.subr.mxu0 0.0
    %300 = vmatpush2.msra.mxu0 0.0
    %301 = vmatprep.subr.mxu0 0.0
    %302 = vmatpush2.msra.mxu0 0.0
    %303 = vmatprep.subr.mxu0 0.0
    %304 = vmatpush2.msra.mxu0 0.0
    %305 = vmatprep.subr.mxu0 0.0
    %306 = vmatpush2.msra.mxu0 0.0
    %307 = vmatprep.mubr.f32.mxu0 0.0
    %308 = vmatmul.mubr.f32.gmra.mxu0 %v220
    %v309 = vpop.f32.mrf.mxu0
    %v310 = vadd.f32 0.0, %v309
    %v311 = vpop.f32.mrf.mxu0
    %312 = vmatprep.mubr.f32.mxu0 0.0
    %313 = vmatmul.mubr.f32.gmra.mxu0 %v223
    %v314 = vpop.f32.mrf.mxu0
    %v315 = vadd.f32 0.0, %v314
    %v316 = vpop.f32.mrf.mxu0
    %317 = vmatprep.mubr.f32.mxu0 0.0
    %318 = vmatmul.mubr.f32.gmra.mxu0 %v226
    %v319 = vpop.f32.mrf.mxu0
    %v320 = vadd.f32 0.0, %v319
    %v321 = vpop.f32.mrf.mxu0
    %322 = vmatprep.mubr.f32.mxu0 0.0
    %323 = vmatmul.mubr.f32.gmra.mxu0 %v229
    %v324 = vpop.f32.mrf.mxu0
    %v325 = vadd.f32 0.0, %v324
    %v326 = vpop.f32.mrf.mxu0
    %327 = vmatprep.mubr.f32.mxu0 0.0
    %328 = vmatmul.mubr.f32.gmra.mxu0 %v232
    %v329 = vpop.f32.mrf.mxu0
    %v330 = vadd.f32 0.0, %v329
    %v331 = vpop.f32.mrf.mxu0
    %332 = vmatprep.mubr.f32.mxu0 0.0
    %333 = vmatmul.mubr.f32.gmra.mxu0 %v235
    %v334 = vpop.f32.mrf.mxu0
    %v335 = vadd.f32 0.0, %v334
    %v336 = vpop.f32.mrf.mxu0
    %337 = vmatprep.mubr.f32.mxu0 0.0
    %338 = vmatmul.mubr.f32.gmra.mxu0 %v238
    %v339 = vpop.f32.mrf.mxu0
    %v340 = vadd.f32 0.0, %v339
    %v341 = vpop.f32.mrf.mxu0
    %342 = vmatprep.mubr.f32.mxu0 0.0
    %343 = vmatmul.mubr.f32.gmra.mxu0 %v241
    %v344 = vpop.f32.mrf.mxu0
    %v345 = vadd.f32 0.0, %v344
    %v346 = vpop.f32.mrf.mxu0
    %347 = vdwg.mxu0
    %v349 = vsel %vm64, %v211, 0
    %v352 = vsel %vm64, %v212, 0
    %v355 = vsel %vm64, %v213, 0
    %v358 = vsel %vm64, %v214, 0
    %v361 = vsel %vm64, %v215, 0
    %v364 = vsel %vm64, %v216, 0
    %v367 = vsel %vm64, %v217, 0
    %v370 = vsel %vm64, %v218, 0
    %372 = vmatprep.subr.mxu0 0.0
    %373 = vmatpush1.msra.mxu0 0.0
    %374 = vmatprep.subr.mxu0 0.0
    %375 = vmatpush1.msra.mxu0 0.0
    %376 = vmatprep.subr.mxu0 0.0
    %377 = vmatpush1.msra.mxu0 0.0
    %378 = vmatprep.subr.mxu0 0.0
    %379 = vmatpush1.msra.mxu0 0.0
    %380 = vmatprep.subr.mxu0 0.0
    %381 = vmatpush1.msra.mxu0 0.0
    %382 = vmatprep.subr.mxu0 0.0
    %383 = vmatpush1.msra.mxu0 0.0
    %384 = vmatprep.subr.mxu0 0.0
    %385 = vmatpush1.msra.mxu0 0.0
    %386 = vmatprep.subr.mxu0 0.0
    %387 = vmatpush1.msra.mxu0 0.0
    %388 = vmatprep.subr.mxu0 0.0
    %389 = vmatpush1.msra.mxu0 0.0
    %390 = vmatprep.subr.mxu0 0.0
    %391 = vmatpush1.msra.mxu0 0.0
    %392 = vmatprep.subr.mxu0 0.0
    %393 = vmatpush1.msra.mxu0 0.0
    %394 = vmatprep.subr.mxu0 0.0
    %395 = vmatpush1.msra.mxu0 0.0
    %396 = vmatprep.subr.mxu0 0.0
    %397 = vmatpush1.msra.mxu0 %v59
    %398 = vmatprep.subr.mxu0 0.0
    %399 = vmatpush1.msra.mxu0 %v58
    %400 = vmatprep.subr.mxu0 0.0
    %401 = vmatpush1.msra.mxu0 %v57
    %402 = vmatprep.subr.mxu0 0.0
    %403 = vmatpush1.msra.mxu0 %v56
    %404 = vmatprep.subr.mxu0 0.0
    %405 = vmatpush2.msra.mxu0 0.0
    %406 = vmatprep.subr.mxu0 0.0
    %407 = vmatpush2.msra.mxu0 0.0
    %408 = vmatprep.subr.mxu0 0.0
    %409 = vmatpush2.msra.mxu0 0.0
    %410 = vmatprep.subr.mxu0 0.0
    %411 = vmatpush2.msra.mxu0 0.0
    %412 = vmatprep.subr.mxu0 0.0
    %413 = vmatpush2.msra.mxu0 0.0
    %414 = vmatprep.subr.mxu0 0.0
    %415 = vmatpush2.msra.mxu0 0.0
    %416 = vmatprep.subr.mxu0 0.0
    %417 = vmatpush2.msra.mxu0 0.0
    %418 = vmatprep.subr.mxu0 0.0
    %419 = vmatpush2.msra.mxu0 0.0
    %420 = vmatprep.subr.mxu0 0.0
    %421 = vmatpush2.msra.mxu0 0.0
    %422 = vmatprep.subr.mxu0 0.0
    %423 = vmatpush2.msra.mxu0 0.0
    %424 = vmatprep.subr.mxu0 0.0
    %425 = vmatpush2.msra.mxu0 0.0
    %426 = vmatprep.subr.mxu0 0.0
    %427 = vmatpush2.msra.mxu0 0.0
    %428 = vmatprep.subr.mxu0 0.0
    %429 = vmatpush2.msra.mxu0 0.0
    %430 = vmatprep.subr.mxu0 0.0
    %431 = vmatpush2.msra.mxu0 0.0
    %432 = vmatprep.subr.mxu0 0.0
    %433 = vmatpush2.msra.mxu0 0.0
    %434 = vmatprep.subr.mxu0 0.0
    %435 = vmatpush2.msra.mxu0 0.0
    %436 = vmatprep.mubr.f32.mxu0 0.0
    %437 = vmatmul.mubr.f32.gmra.mxu0 %v349
    %v438 = vpop.f32.mrf.mxu0
    %v439 = vadd.f32 %v310, %v438
    %v440 = vpop.f32.mrf.mxu0
    %441 = vmatprep.mubr.f32.mxu0 0.0
    %442 = vmatmul.mubr.f32.gmra.mxu0 %v352
    %v443 = vpop.f32.mrf.mxu0
    %v444 = vadd.f32 %v315, %v443
    %v445 = vpop.f32.mrf.mxu0
    %446 = vmatprep.mubr.f32.mxu0 0.0
    %447 = vmatmul.mubr.f32.gmra.mxu0 %v355
    %v448 = vpop.f32.mrf.mxu0
    %v449 = vadd.f32 %v320, %v448
    %v450 = vpop.f32.mrf.mxu0
    %451 = vmatprep.mubr.f32.mxu0 0.0
    %452 = vmatmul.mubr.f32.gmra.mxu0 %v358
    %v453 = vpop.f32.mrf.mxu0
    %v454 = vadd.f32 %v325, %v453
    %v455 = vpop.f32.mrf.mxu0
    %456 = vmatprep.mubr.f32.mxu0 0.0
    %457 = vmatmul.mubr.f32.gmra.mxu0 %v361
    %v458 = vpop.f32.mrf.mxu0
    %v459 = vadd.f32 %v330, %v458
    %v460 = vpop.f32.mrf.mxu0
    %461 = vmatprep.mubr.f32.mxu0 0.0
    %462 = vmatmul.mubr.f32.gmra.mxu0 %v364
    %v463 = vpop.f32.mrf.mxu0
    %v464 = vadd.f32 %v335, %v463
    %v465 = vpop.f32.mrf.mxu0
    %466 = vmatprep.mubr.f32.mxu0 0.0
    %467 = vmatmul.mubr.f32.gmra.mxu0 %v367
    %v468 = vpop.f32.mrf.mxu0
    %v469 = vadd.f32 %v340, %v468
    %v470 = vpop.f32.mrf.mxu0
    %471 = vmatprep.mubr.f32.mxu0 0.0
    %472 = vmatmul.mubr.f32.gmra.mxu0 %v370
    %v473 = vpop.f32.mrf.mxu0
    %v474 = vadd.f32 %v345, %v473
    %v475 = vpop.f32.mrf.mxu0
    %476 = vdwg.mxu0
    %vm477 = vcmp.ge.f32.partialorder %v439, 0.0
    %vm478 = vcmp.ge.f32.partialorder %v444, 0.0
    %vm479 = vcmp.ge.f32.partialorder %v449, 0.0
    %vm480 = vcmp.ge.f32.partialorder %v454, 0.0
    %vm481 = vcmp.ge.f32.partialorder %v459, 0.0
    %vm482 = vcmp.ge.f32.partialorder %v464, 0.0
    %vm483 = vcmp.ge.f32.partialorder %v469, 0.0
    %vm484 = vcmp.ge.f32.partialorder %v474, 0.0
    %v485 = vmul.f32 %v439, 0.2
    %v486 = vmul.f32 %v444, 0.2
    %v487 = vmul.f32 %v449, 0.2
    %v488 = vmul.f32 %v454, 0.2
    %v489 = vmul.f32 %v459, 0.2
    %v490 = vmul.f32 %v464, 0.2
    %v491 = vmul.f32 %v469, 0.2
    %v492 = vmul.f32 %v474, 0.2
    %v493 = vsel %vm477, %v439, %v485
    %v494 = vsel %vm478, %v444, %v486
    %v495 = vsel %vm479, %v449, %v487
    %v496 = vsel %vm480, %v454, %v488
    %v497 = vsel %vm481, %v459, %v489
    %v498 = vsel %vm482, %v464, %v490
    %v499 = vsel %vm483, %v469, %v491
    %v500 = vsel %vm484, %v474, %v492
    %v501 = vlaneseq
    %v502 = vand.u32 %v501, 127
    %v503 = vlaneseq
    %v504 = vshrl.u32 %v503, 7
    %v505 = vsub.s32 0, %v504
    %v506 = vrot.slane %v46, %v505
    %508 = vbcast.lane.b32.xlu0 %v506, 256
    %v509 = vpop.permute.xlu0 %508
    %v510 = vlaneseq
    %v511 = vshrl.u32 %v510, 7
    %v512 = vsub.s32 1, %v511
    %v513 = vrot.slane %v46, %v512
    %515 = vbcast.lane.b32.xlu0 %v513, 256
    %v516 = vpop.permute.xlu0 %515
    %v517 = vlaneseq
    %v518 = vshrl.u32 %v517, 7
    %v519 = vsub.s32 2, %v518
    %v520 = vrot.slane %v46, %v519
    %522 = vbcast.lane.b32.xlu0 %v520, 256
    %v523 = vpop.permute.xlu0 %522
    %v524 = vlaneseq
    %v525 = vshrl.u32 %v524, 7
    %v526 = vsub.s32 3, %v525
    %v527 = vrot.slane %v46, %v526
    %529 = vbcast.lane.b32.xlu0 %v527, 256
    %v530 = vpop.permute.xlu0 %529
    %v531 = vlaneseq
    %v532 = vshrl.u32 %v531, 7
    %v533 = vsub.s32 4, %v532
    %v534 = vrot.slane %v46, %v533
    %536 = vbcast.lane.b32.xlu0 %v534, 256
    %v537 = vpop.permute.xlu0 %536
    %v538 = vlaneseq
    %v539 = vshrl.u32 %v538, 7
    %v540 = vsub.s32 5, %v539
    %v541 = vrot.slane %v46, %v540
    %543 = vbcast.lane.b32.xlu0 %v541, 256
    %v544 = vpop.permute.xlu0 %543
    %v545 = vlaneseq
    %v546 = vshrl.u32 %v545, 7
    %v547 = vsub.s32 6, %v546
    %v548 = vrot.slane %v46, %v547
    %550 = vbcast.lane.b32.xlu0 %v548, 256
    %v551 = vpop.permute.xlu0 %550
    %v552 = vlaneseq
    %v553 = vshrl.u32 %v552, 7
    %v554 = vsub.s32 7, %v553
    %v555 = vrot.slane %v46, %v554
    %557 = vbcast.lane.b32.xlu0 %v555, 256
    %v558 = vpop.permute.xlu0 %557
    %v559 = vsub.s32 %v509, 1
    %v560 = vsub.s32 %v516, 1
    %v561 = vsub.s32 %v523, 1
    %v562 = vsub.s32 %v530, 1
    %v563 = vsub.s32 %v537, 1
    %v564 = vsub.s32 %v544, 1
    %v565 = vsub.s32 %v551, 1
    %v566 = vsub.s32 %v558, 1
    %vm567 = vcmp.eq.s32.totalorder %v502, %v559
    %vm568 = vcmp.eq.s32.totalorder %v502, %v560
    %vm569 = vcmp.eq.s32.totalorder %v502, %v561
    %vm570 = vcmp.eq.s32.totalorder %v502, %v562
    %vm571 = vcmp.eq.s32.totalorder %v502, %v563
    %vm572 = vcmp.eq.s32.totalorder %v502, %v564
    %vm573 = vcmp.eq.s32.totalorder %v502, %v565
    %vm574 = vcmp.eq.s32.totalorder %v502, %v566
    %v575 = vsel %vm567, %v493, 0.0
    %v576 = vsel %vm568, %v494, 0.0
    %v577 = vsel %vm569, %v495, 0.0
    %v578 = vsel %vm570, %v496, 0.0
    %v579 = vsel %vm571, %v497, 0.0
    %v580 = vsel %vm572, %v498, 0.0
    %v581 = vsel %vm573, %v499, 0.0
    %v582 = vsel %vm574, %v500, 0.0
    %vm583 = vcmask 130048
    %v584 = vsel %vm583, %v575, 0.0
    %585 = vadd.xlane.f32.xlu0 %v584
    %v586 = vpop.xlane.xlu0 %585
    %v587 = vsel %vm583, %v576, 0.0
    %588 = vadd.xlane.f32.xlu0 %v587
    %v589 = vpop.xlane.xlu0 %588
    %v590 = vsel %vm583, %v577, 0.0
    %591 = vadd.xlane.f32.xlu0 %v590
    %v592 = vpop.xlane.xlu0 %591
    %v593 = vsel %vm583, %v578, 0.0
    %594 = vadd.xlane.f32.xlu0 %v593
    %v595 = vpop.xlane.xlu0 %594
    %v596 = vsel %vm583, %v579, 0.0
    %597 = vadd.xlane.f32.xlu0 %v596
    %v598 = vpop.xlane.xlu0 %597
    %v599 = vsel %vm583, %v580, 0.0
    %600 = vadd.xlane.f32.xlu0 %v599
    %v601 = vpop.xlane.xlu0 %600
    %v602 = vsel %vm583, %v581, 0.0
    %603 = vadd.xlane.f32.xlu0 %v602
    %v604 = vpop.xlane.xlu0 %603
    %v605 = vsel %vm583, %v582, 0.0
    %606 = vadd.xlane.f32.xlu0 %v605
    %v607 = vpop.xlane.xlu0 %606
    %vm608 = vcmp.ge.s32.totalorder %v46, 1
    %vm609 = vcmp.le.s32.totalorder %v46, 13
    %vm610 = vmand %vm608, %vm609
    %v619 = vlaneseq
    %v620 = vshrl.u32 %v619, 7
    %v621 = vsub.s32 %v502, %v620
    %v622 = vrot.slane %v586, %v621
    %v623 = vlaneseq
    %v624 = vshrl.u32 %v623, 7
    %v625 = vsub.s32 %v502, %v624
    %v626 = vrot.slane %v589, %v625
    %v627 = vlaneseq
    %v628 = vshrl.u32 %v627, 7
    %v629 = vsub.s32 %v502, %v628
    %v630 = vrot.slane %v592, %v629
    %v631 = vlaneseq
    %v632 = vshrl.u32 %v631, 7
    %v633 = vsub.s32 %v502, %v632
    %v634 = vrot.slane %v595, %v633
    %v635 = vlaneseq
    %v636 = vshrl.u32 %v635, 7
    %v637 = vsub.s32 %v502, %v636
    %v638 = vrot.slane %v598, %v637
    %v639 = vlaneseq
    %v640 = vshrl.u32 %v639, 7
    %v641 = vsub.s32 %v502, %v640
    %v642 = vrot.slane %v601, %v641
    %v643 = vlaneseq
    %v644 = vshrl.u32 %v643, 7
    %v645 = vsub.s32 %v502, %v644
    %v646 = vrot.slane %v604, %v645
    %v647 = vlaneseq
    %v648 = vshrl.u32 %v647, 7
    %v649 = vsub.s32 %v502, %v648
    %v650 = vrot.slane %v607, %v649
    %v651 = vsel %vm190, %v626, %v622
    %v652 = vsel %vm193, %v630, %v651
    %v653 = vsel %vm196, %v634, %v652
    %v654 = vsel %vm199, %v638, %v653
    %v655 = vsel %vm202, %v642, %v654
    %v656 = vsel %vm205, %v646, %v655
    %v657 = vsel %vm208, %v650, %v656
    %v659 = vsel %vm610, %v657, -9e+15
    %vm660 = vcmask 64512
    %v661 = vsel %vm660, %v659, -inf
    %662 = vmax.xlane.f32.xlu0 %v661
    %v663 = vpop.xlane.xlu0 %662
    %v664 = vsub.f32 %v659, %v663
    %v665 = vmul.f32 %v664, 1.442695
    %v666 = vpow.pop %v665
    %v667 = vsel %vm660, %v666, 0.0
    %668 = vadd.xlane.f32.xlu0 %v667
    %v669 = vpop.xlane.xlu0 %668
    %v670 = vrcp.pop %v669
    %v671 = vmul.f32 %v666, %v670
    %v673 = vsel %vm660, %v671, 0
    %675 = vmatprep.subr.mxu0 0.0
    %676 = vmatpush1.msra.mxu0 0.0
    %677 = vmatprep.subr.mxu0 0.0
    %678 = vmatpush1.msra.mxu0 0.0
    %679 = vmatprep.subr.mxu0 0.0
    %680 = vmatpush1.msra.mxu0 0.0
    %681 = vmatprep.subr.mxu0 0.0
    %682 = vmatpush1.msra.mxu0 0.0
    %683 = vmatprep.subr.mxu0 0.0
    %684 = vmatpush1.msra.mxu0 0.0
    %685 = vmatprep.subr.mxu0 0.0
    %686 = vmatpush1.msra.mxu0 0.0
    %687 = vmatprep.subr.mxu0 0.0
    %688 = vmatpush1.msra.mxu0 0.0
    %689 = vmatprep.subr.mxu0 0.0
    %690 = vmatpush1.msra.mxu0 0.0
    %691 = vmatprep.subr.mxu0 0.0
    %692 = vmatpush1.msra.mxu0 0.0
    %693 = vmatprep.subr.mxu0 0.0
    %694 = vmatpush1.msra.mxu0 0.0
    %695 = vmatprep.subr.mxu0 0.0
    %696 = vmatpush1.msra.mxu0 0.0
    %697 = vmatprep.subr.mxu0 0.0
    %698 = vmatpush1.msra.mxu0 0.0
    %699 = vmatprep.subr.mxu0 0.0
    %700 = vmatpush1.msra.mxu0 0.0
    %701 = vmatprep.subr.mxu0 0.0
    %702 = vmatpush1.msra.mxu0 0.0
    %703 = vmatprep.subr.mxu0 0.0
    %704 = vmatpush1.msra.mxu0 0.0
    %705 = vmatprep.subr.mxu0 0.0
    %706 = vmatpush1.msra.mxu0 %v209
    %707 = vmatprep.subr.mxu0 0.0
    %708 = vmatpush2.msra.mxu0 0.0
    %709 = vmatprep.subr.mxu0 0.0
    %710 = vmatpush2.msra.mxu0 0.0
    %711 = vmatprep.subr.mxu0 0.0
    %712 = vmatpush2.msra.mxu0 0.0
    %713 = vmatprep.subr.mxu0 0.0
    %714 = vmatpush2.msra.mxu0 0.0
    %715 = vmatprep.subr.mxu0 0.0
    %716 = vmatpush2.msra.mxu0 0.0
    %717 = vmatprep.subr.mxu0 0.0
    %718 = vmatpush2.msra.mxu0 0.0
    %719 = vmatprep.subr.mxu0 0.0
    %720 = vmatpush2.msra.mxu0 0.0
    %721 = vmatprep.subr.mxu0 0.0
    %722 = vmatpush2.msra.mxu0 0.0
    %723 = vmatprep.subr.mxu0 0.0
    %724 = vmatpush2.msra.mxu0 0.0
    %725 = vmatprep.subr.mxu0 0.0
    %726 = vmatpush2.msra.mxu0 0.0
    %727 = vmatprep.subr.mxu0 0.0
    %728 = vmatpush2.msra.mxu0 0.0
    %729 = vmatprep.subr.mxu0 0.0
    %730 = vmatpush2.msra.mxu0 0.0
    %731 = vmatprep.subr.mxu0 0.0
    %732 = vmatpush2.msra.mxu0 0.0
    %733 = vmatprep.subr.mxu0 0.0
    %734 = vmatpush2.msra.mxu0 0.0
    %735 = vmatprep.subr.mxu0 0.0
    %736 = vmatpush2.msra.mxu0 0.0
    %737 = vmatprep.subr.mxu0 0.0
    %738 = vmatpush2.msra.mxu0 0.0
    %739 = vmatprep.mubr.f32.mxu0 0.0
    %740 = vmatmul.mubr.f32.gmra.mxu0 %v673
    %v741 = vpop.f32.mrf.mxu0
    %v742 = vadd.f32 0.0, %v741
    %v743 = vpop.f32.mrf.mxu0
    %744 = vdwg.mxu0
    %745 = vst.msk [vmem:[#allocation5] sm:$0xff] %vm64, %v742
    // Predicated region
    $region30: #{tpu_custom_call.1} parent=1 // pred_check
      _
    $region31: #{tpu_custom_call.1} parent=1 // pred_check_branch
      %747 = sbr.rel (0) target = $region33
    $region32: #{tpu_custom_call.1} parent=1 // pred_region
      %s749 = ssub.s32 128, 128
      %750 = vsyncadd [#allocation4], %s749
      %s752 = sshll.u32 [#allocation5], 4
      %s753 = int_to_ptr.vmem [resolvable:$true] %s752
      %755 = dma.vmem_to_hbm [thread:$0]  %s753, 128, %s6, [#allocation4]
    $region33: #{tpu_custom_call.1} parent=1 // pred_fallthru
      _
    // Predicated region
    $region34: #{tpu_custom_call.1} parent=1 // pred_check
      _
    $region35: #{tpu_custom_call.1} parent=1 // pred_check_branch
      %757 = sbr.rel (0) target = $region37
    $region36: #{tpu_custom_call.1} parent=1 // pred_region
      %758 = dma.done [#allocation4], 128
    $region37: #{tpu_custom_call.1} parent=1 // pred_fallthru
      _
    %759 = vsyncpa [#allocation3], 1
    %760 = vsyncpa [#allocation4], 1

</llo_original>
